<compile_context>
chip_gen: v7x
topology: tpu7x:2x2x1
jax: 0.10.0
libtpu: 0.0.40
codegen_flags: <defaults>
</compile_context>

<pallas_src>
import jax
import jax.numpy as jnp
from jax.experimental import pallas as pl
from jax.experimental.pallas import tpu as pltpu


def _round_up(n, m):
    return ((n + m - 1) // m) * m


def _cdiv(a, b):
    return (a + b - 1) // b


def _vmem_capacity_bytes():
    try:
        return int(pltpu.get_tpu_info().vmem_capacity_bytes)
    except Exception:
        return 64 << 20  # conservative (v7x per-core) fallback


# ---------------------------------------------------------------------------
# Kernels
# ---------------------------------------------------------------------------
def mlp_kernel_fused(x_ref, w1_ref, b1_ref, w2_ref, b2_ref, o_ref):
    """Single-K-step path: whole (padded) vocab slab in VMEM, no accumulator."""
    h = jnp.dot(x_ref[...], w1_ref[...], preferred_element_type=jnp.float32)
    h = jnp.maximum(h + b1_ref[...], 0.0)
    out = jnp.dot(h.astype(w2_ref.dtype), w2_ref[...],
                  preferred_element_type=jnp.float32)
    o_ref[...] = (out + b2_ref[...]).astype(o_ref.dtype)


def mlp_kernel_ksplit(x_ref, w1_ref, b1_ref, w2_ref, b2_ref, o_ref, acc_ref):
    """K-streamed path: fc1 accumulates over K tiles, fc2 fused in the finalize."""
    k = pl.program_id(1)

    @pl.when(k == 0)
    def _():
        # Fold b1 into the accumulator init (no separate bias add later).
        acc_ref[...] = jnp.broadcast_to(b1_ref[...], acc_ref.shape)

    acc_ref[...] += jnp.dot(x_ref[...], w1_ref[...],
                            preferred_element_type=jnp.float32)

    @pl.when(k == pl.num_programs(1) - 1)
    def _():
        h = jnp.maximum(acc_ref[...], 0.0)
        out = jnp.dot(h.astype(w2_ref.dtype), w2_ref[...],
                      preferred_element_type=jnp.float32)
        o_ref[...] = (out + b2_ref[...]).astype(o_ref.dtype)


# ---------------------------------------------------------------------------
# One-time parameter preparation (model-init time, not per forward)
# ---------------------------------------------------------------------------
def prepare_text_classifier_params(w1, b1, w2, b2, *, tk_max=None):
    """Pad + cast weights to kernel layout once.

    w1: [input_size, hidden]   (pre-transposed vs. nn.Linear weight)
    b1: [hidden]
    w2: [hidden, num_classes]  (pre-transposed vs. nn.Linear weight)
    b2: [num_classes]
    """
    input_size, hidden = w1.shape
    num_classes = w2.shape[1]

    hidden_pad = _round_up(hidden, 128)     # lane-dense intermediate
    nc_pad = _round_up(num_classes, 128)    # lane-dense (unmasked) output stores
    kp = _round_up(input_size, 128)

    if tk_max is None:
        # Double-buffered bf16 W1 slab (2 * tk * hidden_pad * 2B) gets ~40% of
        # physical VMEM; capped at 2048 columns.
        budget = int(_vmem_capacity_bytes() * 0.40)
        tk_max = (budget // (2 * hidden_pad * 2)) // 128 * 128
        tk_max = max(128, min(tk_max, 2048))
    tk_max = max(128, _round_up(tk_max, 128))

    nsteps = _cdiv(kp, tk_max)
    tk = _round_up(_cdiv(kp, nsteps), 128)  # bounded zero-padding (< 128*nsteps)
    k_pad = nsteps * tk

    w1p = jnp.pad(w1, ((0, k_pad - input_size),
                       (0, hidden_pad - hidden))).astype(jnp.bfloat16)
    w2p = jnp.pad(w2, ((0, hidden_pad - hidden),
                       (0, nc_pad - num_classes))).astype(jnp.bfloat16)
    b1p = jnp.pad(b1, (0, hidden_pad - hidden)).reshape(1, hidden_pad).astype(jnp.float32)
    b2p = jnp.pad(b2, (0, nc_pad - num_classes)).reshape(1, nc_pad).astype(jnp.float32)

    return dict(
        w1=w1p, b1=b1p, w2=w2p, b2=b2p,
        input_size=input_size, hidden=hidden, num_classes=num_classes,
        hidden_pad=hidden_pad, nc_pad=nc_pad,
        k_pad=k_pad, tk=tk, nsteps=nsteps,
    )


# ---------------------------------------------------------------------------
# Forward
# ---------------------------------------------------------------------------
def text_classifier_forward(params, x):
    """x: [B, input_size] float -> [B, num_classes] float32 logits."""
    B, input_size = x.shape
    assert input_size == params["input_size"]

    hidden_pad = params["hidden_pad"]
    nc_pad = params["nc_pad"]
    k_pad = params["k_pad"]
    tk = params["tk"]
    nsteps = params["nsteps"]
    num_classes = params["num_classes"]

    # Batch tiling: minimal padding, 16-row granularity (bf16 sublane packing),
    # <= 256 rows/tile. Small batches keep a single tile so the W1 HBM stream
    # (the usual bottleneck) is not duplicated per megacore core; large batches
    # naturally produce multiple "parallel" batch tiles.
    ntiles_b = _cdiv(B, 256)
    tile_b = _round_up(_cdiv(B, ntiles_b), 16)
    b_pad = ntiles_b * tile_b

    xb = x.astype(jnp.bfloat16)
    if (b_pad, k_pad) != (B, input_size):
        xb = jnp.pad(xb, ((0, b_pad - B), (0, k_pad - input_size)))

    w1p, b1p, w2p, b2p = params["w1"], params["b1"], params["w2"], params["b2"]

    # Conservative (everything double-buffered) VMEM footprint -> explicit limit.
    if nsteps == 1:
        footprint = (2 * tile_b * k_pad * 2          # x
                     + 2 * k_pad * hidden_pad * 2    # W1
                     + 2 * hidden_pad * nc_pad * 2   # W2
                     + 2 * 8 * hidden_pad * 4 + 2 * 8 * nc_pad * 4
                     + 2 * tile_b * nc_pad * 4)      # out
    else:
        footprint = (2 * tile_b * tk * 2
                     + 2 * tk * hidden_pad * 2
                     + 2 * hidden_pad * nc_pad * 2
                     + 2 * 8 * hidden_pad * 4 + 2 * 8 * nc_pad * 4
                     + 2 * tile_b * nc_pad * 4
                     + tile_b * hidden_pad * 4)      # f32 accumulator scratch
    vmem_limit = min(max(int(footprint * 1.25) + (2 << 20), 32 << 20),
                     int(_vmem_capacity_bytes() * 0.9))

    def _build(single_buffer):
        # Constant-index blocks never change block index -> 1 buffer suffices.
        const_kw = dict(pipeline_mode=pl.Buffered(1)) if single_buffer else {}
        if nsteps == 1:
            grid = (ntiles_b,)
            in_specs = [
                pl.BlockSpec((tile_b, k_pad), lambda i: (i, 0)),
                pl.BlockSpec((k_pad, hidden_pad), lambda i: (0, 0), **const_kw),
                pl.BlockSpec((1, hidden_pad), lambda i: (0, 0), **const_kw),
                pl.BlockSpec((hidden_pad, nc_pad), lambda i: (0, 0), **const_kw),
                pl.BlockSpec((1, nc_pad), lambda i: (0, 0), **const_kw),
            ]
            out_specs = pl.BlockSpec((tile_b, nc_pad), lambda i: (i, 0))
            scratch_shapes = []
            kernel = mlp_kernel_fused
            dim_sem = ("parallel",)
        else:
            grid = (ntiles_b, nsteps)
            in_specs = [
                pl.BlockSpec((tile_b, tk), lambda i, k: (i, k)),
                pl.BlockSpec((tk, hidden_pad), lambda i, k: (k, 0)),
                pl.BlockSpec((1, hidden_pad), lambda i, k: (0, 0), **const_kw),
                pl.BlockSpec((hidden_pad, nc_pad), lambda i, k: (0, 0), **const_kw),
                pl.BlockSpec((1, nc_pad), lambda i, k: (0, 0), **const_kw),
            ]
            out_specs = pl.BlockSpec((tile_b, nc_pad), lambda i, k: (i, 0))
            scratch_shapes = [pltpu.VMEM((tile_b, hidden_pad), jnp.float32)]
            kernel = mlp_kernel_ksplit
            dim_sem = ("parallel", "arbitrary")

        return pl.pallas_call(
            kernel,
            out_shape=jax.ShapeDtypeStruct((b_pad, nc_pad), jnp.float32),
            grid_spec=pltpu.PrefetchScalarGridSpec(
                num_scalar_prefetch=0,
                grid=grid,
                in_specs=in_specs,
                out_specs=out_specs,
                scratch_shapes=scratch_shapes,
            ),
            compiler_params=pltpu.CompilerParams(
                dimension_semantics=dim_sem,
                vmem_limit_bytes=vmem_limit,
            ),
        )

    try:
        out_padded = _build(True)(xb, w1p, b1p, w2p, b2p)
    except Exception:
        # pipeline_mode=pl.Buffered(1) not supported on this jax build:
        # fall back to default (double-buffered) constant blocks.
        out_padded = _build(False)(xb, w1p, b1p, w2p, b2p)

    if (b_pad, nc_pad) != (B, num_classes):
        return out_padded[:B, :num_classes]
    return out_padded


if __name__ == "__main__":
    # Small, self-consistent shapes (vocab size stands in for CountVectorizer output).
    batch = 16
    input_size = 250     # synthetic vocabulary size (not 128-aligned on purpose)
    hidden_size = 128
    num_classes = 5      # e.g. 5 BBC topic labels

    key = jax.random.PRNGKey(0)
    kx, k1, k2, k3, k4 = jax.random.split(key, 5)

    lim1 = 1.0 / (input_size ** 0.5)
    lim2 = 1.0 / (hidden_size ** 0.5)
    w1 = jax.random.uniform(k1, (input_size, hidden_size), jnp.float32, -lim1, lim1)
    b1 = jax.random.uniform(k2, (hidden_size,), jnp.float32, -lim1, lim1)
    w2 = jax.random.uniform(k3, (hidden_size, num_classes), jnp.float32, -lim2, lim2)
    b2 = jax.random.uniform(k4, (num_classes,), jnp.float32, -lim2, lim2)

    # Synthetic bag-of-words-ish input (non-negative counts).
    x = jax.random.uniform(kx, (batch, input_size), jnp.float32, 0.0, 3.0)

    # References: same bf16-in / f32-accumulate recipe, plus loose pure-f32 check.
    xb16, w1b16, w2b16 = (a.astype(jnp.bfloat16) for a in (x, w1, w2))
    h_ref = jnp.maximum(
        jnp.dot(xb16, w1b16, preferred_element_type=jnp.float32) + b1, 0.0)
    ref = jnp.dot(h_ref.astype(jnp.bfloat16), w2b16,
                  preferred_element_type=jnp.float32) + b2
    ref_f32 = jnp.maximum(x @ w1 + b1, 0.0) @ w2 + b2

    # Path 1: auto tk -> single K step -> fused kernel (no accumulator).
    params = prepare_text_classifier_params(w1, b1, w2, b2)
    out = jax.block_until_ready(text_classifier_forward(params, x))
    assert out.shape == (batch, num_classes)
    assert jnp.allclose(out, ref, atol=1e-2, rtol=1e-2)
    assert jnp.allclose(out, ref_f32, atol=0.5, rtol=5e-2)

    # Path 2: force tk_max=128 -> 2 K steps, exercising the accumulator path.
    params_split = prepare_text_classifier_params(w1, b1, w2, b2, tk_max=128)
    out2 = jax.block_until_ready(text_classifier_forward(params_split, x))
    assert out2.shape == (batch, num_classes)
    assert jnp.allclose(out2, ref, atol=1e-2, rtol=1e-2)

    print("KERNEL_OK")
</pallas_src>

<mosaic_0001>
module attributes {stable_mosaic.version = 11 : i64} {
  func.func @mlp_kernel_fused(%arg0: i32, %arg1: memref<16x256xbf16, #tpu.memory_space<vmem>>, %arg2: memref<256x128xbf16, #tpu.memory_space<vmem>>, %arg3: memref<1x128xf32, #tpu.memory_space<vmem>>, %arg4: memref<128x128xbf16, #tpu.memory_space<vmem>>, %arg5: memref<1x128xf32, #tpu.memory_space<vmem>>, %arg6: memref<16x128xf32, #tpu.memory_space<vmem>>) attributes {dimension_semantics = [#tpu.dimension_semantics<parallel>], iteration_bounds = array<i64: 1>, scalar_prefetch = 0 : i64, scratch_operands = 0 : i64, tpu.core_type = #tpu.core_type<tc>, window_params = [{transform_indices = @transform_0, window_bounds = array<i64: 16, 256>}, {pipeline_mode = #tpu.pipeline_mode<synchronous>, transform_indices = @transform_1, window_bounds = array<i64: 256, 128>}, {pipeline_mode = #tpu.pipeline_mode<synchronous>, transform_indices = @transform_2, window_bounds = array<i64: 1, 128>}, {pipeline_mode = #tpu.pipeline_mode<synchronous>, transform_indices = @transform_3, window_bounds = array<i64: 128, 128>}, {pipeline_mode = #tpu.pipeline_mode<synchronous>, transform_indices = @transform_4, window_bounds = array<i64: 1, 128>}, {transform_indices = @transform_5, window_bounds = array<i64: 16, 128>}]} {
    %c0 = arith.constant 0 : index
    %c0_0 = arith.constant 0 : index
    %0 = vector.load %arg1[%c0, %c0_0] : memref<16x256xbf16, #tpu.memory_space<vmem>>, vector<16x256xbf16>
    %c0_1 = arith.constant 0 : index
    %c0_2 = arith.constant 0 : index
    %1 = vector.load %arg2[%c0_1, %c0_2] : memref<256x128xbf16, #tpu.memory_space<vmem>>, vector<256x128xbf16>
    %cst = arith.constant dense<0.000000e+00> : vector<16x128xf32>
    %2 = tpu.matmul %0, %1, %cst {dimension_numbers = #tpu.dot_dimension_numbers<[1], [0], [0], [1], [0, 0, 1, 1], [], []>} : vector<16x256xbf16>, vector<256x128xbf16>, vector<16x128xf32> -> vector<16x128xf32>
    %c0_3 = arith.constant 0 : index
    %c0_4 = arith.constant 0 : index
    %3 = vector.load %arg3[%c0_3, %c0_4] : memref<1x128xf32, #tpu.memory_space<vmem>>, vector<1x128xf32>
    %4 = vector.broadcast %3 : vector<1x128xf32> to vector<16x128xf32>
    %5 = arith.addf %2, %4 : vector<16x128xf32>
    %cst_5 = arith.constant 0.000000e+00 : f32
    %6 = vector.broadcast %cst_5 : f32 to vector<16x128xf32>
    %7 = arith.maximumf %5, %6 : vector<16x128xf32>
    %8 = arith.truncf %7 : vector<16x128xf32> to vector<16x128xbf16>
    %c0_6 = arith.constant 0 : index
    %c0_7 = arith.constant 0 : index
    %9 = vector.load %arg4[%c0_6, %c0_7] : memref<128x128xbf16, #tpu.memory_space<vmem>>, vector<128x128xbf16>
    %cst_8 = arith.constant dense<0.000000e+00> : vector<16x128xf32>
    %10 = tpu.matmul %8, %9, %cst_8 {dimension_numbers = #tpu.dot_dimension_numbers<[1], [0], [0], [1], [0, 0, 1, 1], [], []>} : vector<16x128xbf16>, vector<128x128xbf16>, vector<16x128xf32> -> vector<16x128xf32>
    %c0_9 = arith.constant 0 : index
    %c0_10 = arith.constant 0 : index
    %11 = vector.load %arg5[%c0_9, %c0_10] : memref<1x128xf32, #tpu.memory_space<vmem>>, vector<1x128xf32>
    %12 = vector.broadcast %11 : vector<1x128xf32> to vector<16x128xf32>
    %13 = arith.addf %10, %12 : vector<16x128xf32>
    %c0_11 = arith.constant 0 : index
    %c0_12 = arith.constant 0 : index
    %14 = vector.load %arg6[%c0_11, %c0_12] : memref<16x128xf32, #tpu.memory_space<vmem>>, vector<16x128xf32>
    tpu.vector_store %arg6[%c0_11, %c0_12], %13 {strides = array<i32>} : memref<16x128xf32, #tpu.memory_space<vmem>>, vector<16x128xf32>,
    return
  }
  func.func @transform_0(%arg0: i32) -> (i32, i32) {
    %c0_i32 = arith.constant 0 : i32
    %c0_i32_0 = arith.constant 0 : i32
    return %arg0, %c0_i32 : i32, i32
  }
  func.func @transform_1(%arg0: i32) -> (i32, i32) {
    %c0_i32 = arith.constant 0 : i32
    %c0_i32_0 = arith.constant 0 : i32
    %c0_i32_1 = arith.constant 0 : i32
    return %c0_i32, %c0_i32_0 : i32, i32
  }
  func.func @transform_2(%arg0: i32) -> (i32, i32) {
    %c0_i32 = arith.constant 0 : i32
    %c0_i32_0 = arith.constant 0 : i32
    %c0_i32_1 = arith.constant 0 : i32
    return %c0_i32, %c0_i32_0 : i32, i32
  }
  func.func @transform_3(%arg0: i32) -> (i32, i32) {
    %c0_i32 = arith.constant 0 : i32
    %c0_i32_0 = arith.constant 0 : i32
    %c0_i32_1 = arith.constant 0 : i32
    return %c0_i32, %c0_i32_0 : i32, i32
  }
  func.func @transform_4(%arg0: i32) -> (i32, i32) {
    %c0_i32 = arith.constant 0 : i32
    %c0_i32_0 = arith.constant 0 : i32
    %c0_i32_1 = arith.constant 0 : i32
    return %c0_i32, %c0_i32_0 : i32, i32
  }
  func.func @transform_5(%arg0: i32) -> (i32, i32) {
    %c0_i32 = arith.constant 0 : i32
    %c0_i32_0 = arith.constant 0 : i32
    return %arg0, %c0_i32 : i32, i32
  }
}

module attributes {stable_mosaic.version = 11 : i64} {
  func.func @mlp_kernel_fused(%arg0: i32, %arg1: memref<16x256xbf16, #tpu.memory_space<vmem>>, %arg2: memref<256x128xbf16, #tpu.memory_space<vmem>>, %arg3: memref<1x128xf32, #tpu.memory_space<vmem>>, %arg4: memref<128x128xbf16, #tpu.memory_space<vmem>>, %arg5: memref<1x128xf32, #tpu.memory_space<vmem>>, %arg6: memref<16x128xf32, #tpu.memory_space<vmem>>) attributes {dimension_semantics = [#tpu.dimension_semantics<parallel>], iteration_bounds = array<i64: 1>, scalar_prefetch = 0 : i64, scratch_operands = 0 : i64, tpu.core_type = #tpu.core_type<tc>, window_params = [{transform_indices = @transform_0, window_bounds = array<i64: 16, 256>}, {pipeline_mode = #tpu.pipeline_mode<synchronous>, transform_indices = @transform_1, window_bounds = array<i64: 256, 128>}, {pipeline_mode = #tpu.pipeline_mode<synchronous>, transform_indices = @transform_2, window_bounds = array<i64: 1, 128>}, {pipeline_mode = #tpu.pipeline_mode<synchronous>, transform_indices = @transform_3, window_bounds = array<i64: 128, 128>}, {pipeline_mode = #tpu.pipeline_mode<synchronous>, transform_indices = @transform_4, window_bounds = array<i64: 1, 128>}, {transform_indices = @transform_5, window_bounds = array<i64: 16, 128>}]} {
    %c0 = arith.constant 0 : index
    %c0_0 = arith.constant 0 : index
    %0 = vector.load %arg1[%c0, %c0_0] : memref<16x256xbf16, #tpu.memory_space<vmem>>, vector<16x256xbf16>
    %c0_1 = arith.constant 0 : index
    %c0_2 = arith.constant 0 : index
    %1 = vector.load %arg2[%c0_1, %c0_2] : memref<256x128xbf16, #tpu.memory_space<vmem>>, vector<256x128xbf16>
    %cst = arith.constant dense<0.000000e+00> : vector<16x128xf32>
    %2 = tpu.matmul %0, %1, %cst {dimension_numbers = #tpu.dot_dimension_numbers<[1], [0], [0], [1], [0, 0, 1, 1], [], []>} : vector<16x256xbf16>, vector<256x128xbf16>, vector<16x128xf32> -> vector<16x128xf32>
    %c0_3 = arith.constant 0 : index
    %c0_4 = arith.constant 0 : index
    %3 = vector.load %arg3[%c0_3, %c0_4] : memref<1x128xf32, #tpu.memory_space<vmem>>, vector<1x128xf32>
    %4 = vector.broadcast %3 : vector<1x128xf32> to vector<16x128xf32>
    %5 = arith.addf %2, %4 : vector<16x128xf32>
    %cst_5 = arith.constant 0.000000e+00 : f32
    %6 = vector.broadcast %cst_5 : f32 to vector<16x128xf32>
    %7 = arith.maximumf %5, %6 : vector<16x128xf32>
    %8 = arith.truncf %7 : vector<16x128xf32> to vector<16x128xbf16>
    %c0_6 = arith.constant 0 : index
    %c0_7 = arith.constant 0 : index
    %9 = vector.load %arg4[%c0_6, %c0_7] : memref<128x128xbf16, #tpu.memory_space<vmem>>, vector<128x128xbf16>
    %cst_8 = arith.constant dense<0.000000e+00> : vector<16x128xf32>
    %10 = tpu.matmul %8, %9, %cst_8 {dimension_numbers = #tpu.dot_dimension_numbers<[1], [0], [0], [1], [0, 0, 1, 1], [], []>} : vector<16x128xbf16>, vector<128x128xbf16>, vector<16x128xf32> -> vector<16x128xf32>
    %c0_9 = arith.constant 0 : index
    %c0_10 = arith.constant 0 : index
    %11 = vector.load %arg5[%c0_9, %c0_10] : memref<1x128xf32, #tpu.memory_space<vmem>>, vector<1x128xf32>
    %12 = vector.broadcast %11 : vector<1x128xf32> to vector<16x128xf32>
    %13 = arith.addf %10, %12 : vector<16x128xf32>
    %c0_11 = arith.constant 0 : index
    %c0_12 = arith.constant 0 : index
    %14 = vector.load %arg6[%c0_11, %c0_12] : memref<16x128xf32, #tpu.memory_space<vmem>>, vector<16x128xf32>
    tpu.vector_store %arg6[%c0_11, %c0_12], %13 {strides = array<i32>} : memref<16x128xf32, #tpu.memory_space<vmem>>, vector<16x128xf32>,
    return
  }
  func.func @transform_0(%arg0: i32) -> (i32, i32) {
    %c0_i32 = arith.constant 0 : i32
    %c0_i32_0 = arith.constant 0 : i32
    return %arg0, %c0_i32 : i32, i32
  }
  func.func @transform_1(%arg0: i32) -> (i32, i32) {
    %c0_i32 = arith.constant 0 : i32
    %c0_i32_0 = arith.constant 0 : i32
    %c0_i32_1 = arith.constant 0 : i32
    return %c0_i32, %c0_i32_0 : i32, i32
  }
  func.func @transform_2(%arg0: i32) -> (i32, i32) {
    %c0_i32 = arith.constant 0 : i32
    %c0_i32_0 = arith.constant 0 : i32
    %c0_i32_1 = arith.constant 0 : i32
    return %c0_i32, %c0_i32_0 : i32, i32
  }
  func.func @transform_3(%arg0: i32) -> (i32, i32) {
    %c0_i32 = arith.constant 0 : i32
    %c0_i32_0 = arith.constant 0 : i32
    %c0_i32_1 = arith.constant 0 : i32
    return %c0_i32, %c0_i32_0 : i32, i32
  }
  func.func @transform_4(%arg0: i32) -> (i32, i32) {
    %c0_i32 = arith.constant 0 : i32
    %c0_i32_0 = arith.constant 0 : i32
    %c0_i32_1 = arith.constant 0 : i32
    return %c0_i32, %c0_i32_0 : i32, i32
  }
  func.func @transform_5(%arg0: i32) -> (i32, i32) {
    %c0_i32 = arith.constant 0 : i32
    %c0_i32_0 = arith.constant 0 : i32
    return %arg0, %c0_i32 : i32, i32
  }
}

</mosaic_0001>

<llo_original>
// kernel: tpu_custom_call.1
$region0: #{tpu_custom_call.1}
  #allocation0 [shape = 'u32[]', space=smem, size = 0x4, offset = 0x4, fixed_abs, tag = 'smem constant byte address 0x4 - core index']
  #allocation1 [shape = 'u32[144,128]{1,0:T(1,128)}', space=vmem, size = 0x12000, scoped, tag = 'internal scratch']
  %s0 = inlined_call_operand.hbm [shape: bf16[16,256], index: 0, kind: input, shape index: {}]
  %s1 = inlined_call_operand.hbm [shape: bf16[256,128], index: 1, kind: input, shape index: {}]
  %s2 = inlined_call_operand.vmem [shape: f32[1,128], index: 2, kind: input, shape index: {}]
  %s3 = inlined_call_operand.hbm [shape: bf16[128,128], index: 3, kind: input, shape index: {}]
  %s4 = inlined_call_operand.vmem [shape: f32[1,128], index: 4, kind: input, shape index: {}]
  %s5 = inlined_call_operand.hbm [shape: f32[16,128], index: 5, kind: output, shape index: {}]
  %s6 = sld [smem:[#allocation0]]
  $region42: #{tpu_custom_call.1} parent=0
    _
  %s8 = ssub.s32 1, %s6
  %s9 = scalar_select 0, %s8, %s6
  $region1: #{tpu_custom_call.1} parent=0
    #allocation2 [shape = 'u8[8192]{0}', space=vmem, size = 0x2000, scoped, tag = 'input window, operand 0, single buffered']
    #allocation3 [shape = 's32[1]{0}', space=sflag, size = 0x4, scoped, tag = 'scoped memory for tpu_custom_call.1']
    #allocation4 [shape = 's32[1]{0}', space=sflag, size = 0x4, scoped, tag = 'scoped memory for tpu_custom_call.1']
    #allocation5 [shape = 'u8[65536]{0}', space=vmem, size = 0x10000, scoped, tag = 'input window, operand 1, single buffered']
    #allocation6 [shape = 's32[1]{0}', space=sflag, size = 0x4, scoped, tag = 'scoped memory for tpu_custom_call.1']
    #allocation7 [shape = 'u8[32768]{0}', space=vmem, size = 0x8000, scoped, tag = 'input window, operand 3, single buffered']
    #allocation8 [shape = 'u8[8192]{0}', space=vmem, size = 0x2000, scoped, tag = 'output window, operand 0, single buffered']
    %10 = vsyncpa [#allocation3], 0
    %11 = vsyncpa [#allocation6], 0
    %12 = vsyncpa [#allocation4], 0
    // Predicated region
    $region2: #{tpu_custom_call.1} parent=1 // pred_check
      _
    $region3: #{tpu_custom_call.1} parent=1 // pred_check_branch
      %14 = sbr.rel (0) target = $region5
    $region4: #{tpu_custom_call.1} parent=1 // pred_region
      %s16 = ssub.s32 256, 256
      %17 = vsyncadd [#allocation3], %s16
      %s18 = sshll.u32 [#allocation2], 4
      %s19 = int_to_ptr.vmem [resolvable:$true] %s18
      %24 = dma.hbm_to_vmem [thread:$0]  %s0, 256, %s19, [#allocation3], 128, 128, 8
    $region5: #{tpu_custom_call.1} parent=1 // pred_fallthru
      _
    // Predicated region
    $region6: #{tpu_custom_call.1} parent=1 // pred_check
      _
    $region7: #{tpu_custom_call.1} parent=1 // pred_check_branch
      %26 = sbr.rel (0) target = $region9
    $region8: #{tpu_custom_call.1} parent=1 // pred_region
      %s28 = ssub.s32 2048, 2048
      %29 = vsyncadd [#allocation6], %s28
      %s30 = sshll.u32 [#allocation5], 4
      %s31 = int_to_ptr.vmem [resolvable:$true] %s30
      %36 = dma.hbm_to_vmem [thread:$0]  %s1, 2048, %s31, [#allocation6], 64, 64, 4
    $region9: #{tpu_custom_call.1} parent=1 // pred_fallthru
      _
    // Predicated region
    $region10: #{tpu_custom_call.1} parent=1 // pred_check
      _
    $region11: #{tpu_custom_call.1} parent=1 // pred_check_branch
      %38 = sbr.rel (0) target = $region13
    $region12: #{tpu_custom_call.1} parent=1 // pred_region
      _
    $region13: #{tpu_custom_call.1} parent=1 // pred_fallthru
      _
    // Predicated region
    $region14: #{tpu_custom_call.1} parent=1 // pred_check
      _
    $region15: #{tpu_custom_call.1} parent=1 // pred_check_branch
      %40 = sbr.rel (0) target = $region17
    $region16: #{tpu_custom_call.1} parent=1 // pred_region
      %s42 = ssub.s32 1024, 1024
      %43 = vsyncadd [#allocation6], %s42
      %s44 = sshll.u32 [#allocation7], 4
      %s45 = int_to_ptr.vmem [resolvable:$true] %s44
      %50 = dma.hbm_to_vmem [thread:$0]  %s3, 1024, %s45, [#allocation6], 64, 64, 4
    $region17: #{tpu_custom_call.1} parent=1 // pred_fallthru
      _
    // Predicated region
    $region18: #{tpu_custom_call.1} parent=1 // pred_check
      _
    $region19: #{tpu_custom_call.1} parent=1 // pred_check_branch
      %52 = sbr.rel (0) target = $region21
    $region20: #{tpu_custom_call.1} parent=1 // pred_region
      _
    $region21: #{tpu_custom_call.1} parent=1 // pred_fallthru
      _
    // Predicated region
    $region22: #{tpu_custom_call.1} parent=1 // pred_check
      _
    $region23: #{tpu_custom_call.1} parent=1 // pred_check_branch
      %54 = sbr.rel (0) target = $region25
    $region24: #{tpu_custom_call.1} parent=1 // pred_region
      %55 = dma.done [#allocation3], 256
    $region25: #{tpu_custom_call.1} parent=1 // pred_fallthru
      _
    // Predicated region
    $region26: #{tpu_custom_call.1} parent=1 // pred_check
      _
    $region27: #{tpu_custom_call.1} parent=1 // pred_check_branch
      %57 = sbr.rel (0) target = $region29
    $region28: #{tpu_custom_call.1} parent=1 // pred_region
      %58 = dma.done [#allocation6], 2048
    $region29: #{tpu_custom_call.1} parent=1 // pred_fallthru
      _
    // Predicated region
    $region30: #{tpu_custom_call.1} parent=1 // pred_check
      _
    $region31: #{tpu_custom_call.1} parent=1 // pred_check_branch
      %60 = sbr.rel (0) target = $region33
    $region32: #{tpu_custom_call.1} parent=1 // pred_region
      %61 = dma.done [#allocation6], 1024
    $region33: #{tpu_custom_call.1} parent=1 // pred_fallthru
      _
    %v63 = vld [vmem:[#allocation2] sm:$0xff]
    %v64 = vld [vmem:[#allocation2 + $0x8] sm:$0xff]
    %v65 = vld [vmem:[#allocation5] sm:$0xf]
    %v66 = vld [vmem:[#allocation5 + $0x4] sm:$0xf]
    %v67 = vld [vmem:[#allocation5 + $0x8] sm:$0xf]
    %v68 = vld [vmem:[#allocation5 + $0xc] sm:$0xf]
    %v69 = vld [vmem:[#allocation5 + $0x10] sm:$0xf]
    %v70 = vld [vmem:[#allocation5 + $0x14] sm:$0xf]
    %v71 = vld [vmem:[#allocation5 + $0x18] sm:$0xf]
    %v72 = vld [vmem:[#allocation5 + $0x1c] sm:$0xf]
    %v73 = vld [vmem:[#allocation5 + $0x20] sm:$0xf]
    %v74 = vld [vmem:[#allocation5 + $0x24] sm:$0xf]
    %v75 = vld [vmem:[#allocation5 + $0x28] sm:$0xf]
    %v76 = vld [vmem:[#allocation5 + $0x2c] sm:$0xf]
    %v77 = vld [vmem:[#allocation5 + $0x30] sm:$0xf]
    %v78 = vld [vmem:[#allocation5 + $0x34] sm:$0xf]
    %v79 = vld [vmem:[#allocation5 + $0x38] sm:$0xf]
    %v80 = vld [vmem:[#allocation5 + $0x3c] sm:$0xf]
    %v81 = vld [vmem:[#allocation5 + $0x40] sm:$0xf]
    %v82 = vld [vmem:[#allocation5 + $0x44] sm:$0xf]
    %v83 = vld [vmem:[#allocation5 + $0x48] sm:$0xf]
    %v84 = vld [vmem:[#allocation5 + $0x4c] sm:$0xf]
    %v85 = vld [vmem:[#allocation5 + $0x50] sm:$0xf]
    %v86 = vld [vmem:[#allocation5 + $0x54] sm:$0xf]
    %v87 = vld [vmem:[#allocation5 + $0x58] sm:$0xf]
    %v88 = vld [vmem:[#allocation5 + $0x5c] sm:$0xf]
    %v89 = vld [vmem:[#allocation5 + $0x60] sm:$0xf]
    %v90 = vld [vmem:[#allocation5 + $0x64] sm:$0xf]
    %v91 = vld [vmem:[#allocation5 + $0x68] sm:$0xf]
    %v92 = vld [vmem:[#allocation5 + $0x6c] sm:$0xf]
    %v93 = vld [vmem:[#allocation5 + $0x70] sm:$0xf]
    %v94 = vld [vmem:[#allocation5 + $0x74] sm:$0xf]
    %v95 = vld [vmem:[#allocation5 + $0x78] sm:$0xf]
    %v96 = vld [vmem:[#allocation5 + $0x7c] sm:$0xf]
    %v97 = vld [vmem:[%s2] sm:$0x1]
    %v99 = vlaneseq
    %v100 = vshrl.u32 %v99, 7
    %v101 = vsub.s32 0, %v100
    %v102 = vrot.slane %v97, %v101
    %v106 = vunpack.c.l.b16 %v63
    %v107 = vunpack.c.h.b16 %v63
    %v108 = vunpack.c.l.b16 %v64
    %v109 = vunpack.c.h.b16 %v64
    %v110 = vpack.c.b16 %v108, %v106
    %v111 = vpack.c.b16 %v109, %v107
    %v146 = vunpack.c.l.b16 %v65
    %v147 = vunpack.c.l.b16 %v66
    %v148 = vunpack.c.l.b16 %v67
    %v149 = vunpack.c.l.b16 %v68
    %v150 = vunpack.c.l.b16 %v69
    %v151 = vunpack.c.l.b16 %v70
    %v152 = vunpack.c.l.b16 %v71
    %v153 = vunpack.c.l.b16 %v72
    %v154 = vunpack.c.l.b16 %v73
    %v155 = vunpack.c.l.b16 %v74
    %v156 = vunpack.c.l.b16 %v75
    %v157 = vunpack.c.l.b16 %v76
    %v158 = vunpack.c.l.b16 %v77
    %v159 = vunpack.c.l.b16 %v78
    %v160 = vunpack.c.l.b16 %v79
    %v161 = vunpack.c.l.b16 %v80
    %v162 = vunpack.c.l.b16 %v81
    %v163 = vunpack.c.l.b16 %v82
    %v164 = vunpack.c.l.b16 %v83
    %v165 = vunpack.c.l.b16 %v84
    %v166 = vunpack.c.l.b16 %v85
    %v167 = vunpack.c.l.b16 %v86
    %v168 = vunpack.c.l.b16 %v87
    %v169 = vunpack.c.l.b16 %v88
    %v170 = vunpack.c.l.b16 %v89
    %v171 = vunpack.c.l.b16 %v90
    %v172 = vunpack.c.l.b16 %v91
    %v173 = vunpack.c.l.b16 %v92
    %v174 = vunpack.c.l.b16 %v93
    %v175 = vunpack.c.l.b16 %v94
    %v176 = vunpack.c.l.b16 %v95
    %v177 = vunpack.c.l.b16 %v96
    %v178 = vpack.c.b16 %v147, %v146
    %v179 = vpack.c.b16 %v149, %v148
    %v180 = vpack.c.b16 %v151, %v150
    %v181 = vpack.c.b16 %v153, %v152
    %v182 = vpack.c.b16 %v155, %v154
    %v183 = vpack.c.b16 %v157, %v156
    %v184 = vpack.c.b16 %v159, %v158
    %v185 = vpack.c.b16 %v161, %v160
    %v186 = vpack.c.b16 %v163, %v162
    %v187 = vpack.c.b16 %v165, %v164
    %v188 = vpack.c.b16 %v167, %v166
    %v189 = vpack.c.b16 %v169, %v168
    %v190 = vpack.c.b16 %v171, %v170
    %v191 = vpack.c.b16 %v173, %v172
    %v192 = vpack.c.b16 %v175, %v174
    %v193 = vpack.c.b16 %v177, %v176
    %210 = vmatprep.subr.bf16.mxu0 0
    %211 = vmatpush1.bf16.msra.mxu0 %v178
    %212 = vmatprep.subr.bf16.mxu0 0
    %213 = vmatpush1.bf16.msra.mxu0 %v179
    %214 = vmatprep.subr.bf16.mxu0 0
    %215 = vmatpush1.bf16.msra.mxu0 %v180
    %216 = vmatprep.subr.bf16.mxu0 0
    %217 = vmatpush1.bf16.msra.mxu0 %v181
    %218 = vmatprep.subr.bf16.mxu0 0
    %219 = vmatpush1.bf16.msra.mxu0 %v182
    %220 = vmatprep.subr.bf16.mxu0 0
    %221 = vmatpush1.bf16.msra.mxu0 %v183
    %222 = vmatprep.subr.bf16.mxu0 0
    %223 = vmatpush1.bf16.msra.mxu0 %v184
    %224 = vmatprep.subr.bf16.mxu0 0
    %225 = vmatpush1.bf16.msra.mxu0 %v185
    %226 = vmatprep.subr.bf16.mxu0 0
    %227 = vmatpush1.bf16.msra.mxu0 %v186
    %228 = vmatprep.subr.bf16.mxu0 0
    %229 = vmatpush1.bf16.msra.mxu0 %v187
    %230 = vmatprep.subr.bf16.mxu0 0
    %231 = vmatpush1.bf16.msra.mxu0 %v188
    %232 = vmatprep.subr.bf16.mxu0 0
    %233 = vmatpush1.bf16.msra.mxu0 %v189
    %234 = vmatprep.subr.bf16.mxu0 0
    %235 = vmatpush1.bf16.msra.mxu0 %v190
    %236 = vmatprep.subr.bf16.mxu0 0
    %237 = vmatpush1.bf16.msra.mxu0 %v191
    %238 = vmatprep.subr.bf16.mxu0 0
    %239 = vmatpush1.bf16.msra.mxu0 %v192
    %240 = vmatprep.subr.bf16.mxu0 0
    %241 = vmatpush1.bf16.msra.mxu0 %v193
    %242 = vmatprep.mubr.bf16.mxu0 %v111
    %243 = vmatmul.mubr.bf16.gmra.mrb[0].mxu0 %v110
    %v244 = vpop.f32.mrb[0].mxu0
    %v245 = vadd.f32 %v102, %v244
    %v246 = vpop.f32.mrb[0].mxu0
    %v247 = vpop.f32.mrb[0].mxu0
    %v248 = vadd.f32 %v102, %v247
    %v249 = vpop.f32.mrb[0].mxu0
    %250 = vdwg.mxu0
    %v251 = vmax.f32 %v245, 0.0
    %v252 = vmax.f32 %v248, 0.0
    %v253 = vpack.c.bf16 %v252, %v251
    %v254 = vld [vmem:[#allocation7] sm:$0xf]
    %v255 = vld [vmem:[#allocation7 + $0x4] sm:$0xf]
    %v256 = vld [vmem:[#allocation7 + $0x8] sm:$0xf]
    %v257 = vld [vmem:[#allocation7 + $0xc] sm:$0xf]
    %v258 = vld [vmem:[#allocation7 + $0x10] sm:$0xf]
    %v259 = vld [vmem:[#allocation7 + $0x14] sm:$0xf]
    %v260 = vld [vmem:[#allocation7 + $0x18] sm:$0xf]
    %v261 = vld [vmem:[#allocation7 + $0x1c] sm:$0xf]
    %v262 = vld [vmem:[#allocation7 + $0x20] sm:$0xf]
    %v263 = vld [vmem:[#allocation7 + $0x24] sm:$0xf]
    %v264 = vld [vmem:[#allocation7 + $0x28] sm:$0xf]
    %v265 = vld [vmem:[#allocation7 + $0x2c] sm:$0xf]
    %v266 = vld [vmem:[#allocation7 + $0x30] sm:$0xf]
    %v267 = vld [vmem:[#allocation7 + $0x34] sm:$0xf]
    %v268 = vld [vmem:[#allocation7 + $0x38] sm:$0xf]
    %v269 = vld [vmem:[#allocation7 + $0x3c] sm:$0xf]
    %v270 = vld [vmem:[%s4] sm:$0x1]
    %v272 = vlaneseq
    %v273 = vshrl.u32 %v272, 7
    %v274 = vsub.s32 0, %v273
    %v275 = vrot.slane %v270, %v274
    %v293 = vunpack.c.l.b16 %v254
    %v294 = vunpack.c.l.b16 %v255
    %v295 = vunpack.c.l.b16 %v256
    %v296 = vunpack.c.l.b16 %v257
    %v297 = vunpack.c.l.b16 %v258
    %v298 = vunpack.c.l.b16 %v259
    %v299 = vunpack.c.l.b16 %v260
    %v300 = vunpack.c.l.b16 %v261
    %v301 = vunpack.c.l.b16 %v262
    %v302 = vunpack.c.l.b16 %v263
    %v303 = vunpack.c.l.b16 %v264
    %v304 = vunpack.c.l.b16 %v265
    %v305 = vunpack.c.l.b16 %v266
    %v306 = vunpack.c.l.b16 %v267
    %v307 = vunpack.c.l.b16 %v268
    %v308 = vunpack.c.l.b16 %v269
    %v309 = vpack.c.b16 %v294, %v293
    %v310 = vpack.c.b16 %v296, %v295
    %v311 = vpack.c.b16 %v298, %v297
    %v312 = vpack.c.b16 %v300, %v299
    %v313 = vpack.c.b16 %v302, %v301
    %v314 = vpack.c.b16 %v304, %v303
    %v315 = vpack.c.b16 %v306, %v305
    %v316 = vpack.c.b16 %v308, %v307
    %325 = vmatprep.subr.bf16.mxu0 0
    %326 = vmatpush1.bf16.msra.mxu0 %v309
    %327 = vmatprep.subr.bf16.mxu0 0
    %328 = vmatpush1.bf16.msra.mxu0 %v310
    %329 = vmatprep.subr.bf16.mxu0 0
    %330 = vmatpush1.bf16.msra.mxu0 %v311
    %331 = vmatprep.subr.bf16.mxu0 0
    %332 = vmatpush1.bf16.msra.mxu0 %v312
    %333 = vmatprep.subr.bf16.mxu0 0
    %334 = vmatpush1.bf16.msra.mxu0 %v313
    %335 = vmatprep.subr.bf16.mxu0 0
    %336 = vmatpush1.bf16.msra.mxu0 %v314
    %337 = vmatprep.subr.bf16.mxu0 0
    %338 = vmatpush1.bf16.msra.mxu0 %v315
    %339 = vmatprep.subr.bf16.mxu0 0
    %340 = vmatpush1.bf16.msra.mxu0 %v316
    %341 = vmatprep.subr.bf16.mxu0 0
    %342 = vmatpush1.bf16.msra.mxu0 0
    %343 = vmatprep.subr.bf16.mxu0 0
    %344 = vmatpush1.bf16.msra.mxu0 0
    %345 = vmatprep.subr.bf16.mxu0 0
    %346 = vmatpush1.bf16.msra.mxu0 0
    %347 = vmatprep.subr.bf16.mxu0 0
    %348 = vmatpush1.bf16.msra.mxu0 0
    %349 = vmatprep.subr.bf16.mxu0 0
    %350 = vmatpush1.bf16.msra.mxu0 0
    %351 = vmatprep.subr.bf16.mxu0 0
    %352 = vmatpush1.bf16.msra.mxu0 0
    %353 = vmatprep.subr.bf16.mxu0 0
    %354 = vmatpush1.bf16.msra.mxu0 0
    %355 = vmatprep.subr.bf16.mxu0 0
    %356 = vmatpush1.bf16.msra.mxu0 0
    %357 = vmatprep.mubr.bf16.mxu0 0
    %358 = vmatmul.mubr.bf16.gmra.mrb[0].mxu0 %v253
    %v359 = vpop.f32.mrb[0].mxu0
    %v360 = vadd.f32 %v275, %v359
    %v361 = vpop.f32.mrb[0].mxu0
    %v362 = vpop.f32.mrb[0].mxu0
    %v363 = vadd.f32 %v275, %v362
    %v364 = vpop.f32.mrb[0].mxu0
    %365 = vdwg.mxu0
    %366 = vst [vmem:[#allocation8] sm:$0xff] %v360
    %367 = vst [vmem:[#allocation8 + $0x8] sm:$0xff] %v363
    // Predicated region
    $region34: #{tpu_custom_call.1} parent=1 // pred_check
      _
    $region35: #{tpu_custom_call.1} parent=1 // pred_check_branch
      %369 = sbr.rel (0) target = $region37
    $region36: #{tpu_custom_call.1} parent=1 // pred_region
      %s371 = ssub.s32 256, 256
      %372 = vsyncadd [#allocation4], %s371
      %s373 = sshll.u32 [#allocation8], 4
      %s374 = int_to_ptr.vmem [resolvable:$true] %s373
      %379 = dma.vmem_to_hbm [thread:$0]  %s374, 256, %s5, [#allocation4], 128, 128, 8
    $region37: #{tpu_custom_call.1} parent=1 // pred_fallthru
      _
    // Predicated region
    $region38: #{tpu_custom_call.1} parent=1 // pred_check
      _
    $region39: #{tpu_custom_call.1} parent=1 // pred_check_branch
      %381 = sbr.rel (0) target = $region41
    $region40: #{tpu_custom_call.1} parent=1 // pred_region
      %382 = dma.done [#allocation4], 256
    $region41: #{tpu_custom_call.1} parent=1 // pred_fallthru
      _
    %383 = vsyncpa [#allocation3], 1
    %384 = vsyncpa [#allocation6], 1
    %385 = vsyncpa [#allocation4], 1

// kernel: tpu_custom_call.1
$region0: #{tpu_custom_call.1}
  #allocation0 [shape = 'u32[]', space=smem, size = 0x4, offset = 0x4, fixed_abs, tag = 'smem constant byte address 0x4 - core index']
  #allocation1 [shape = 'u32[144,128]{1,0:T(1,128)}', space=vmem, size = 0x12000, scoped, tag = 'internal scratch']
  %s0 = inlined_call_operand.hbm [shape: bf16[16,256], index: 0, kind: input, shape index: {}]
  %s1 = inlined_call_operand.hbm [shape: bf16[256,128], index: 1, kind: input, shape index: {}]
  %s2 = inlined_call_operand.vmem [shape: f32[1,128], index: 2, kind: input, shape index: {}]
  %s3 = inlined_call_operand.hbm [shape: bf16[128,128], index: 3, kind: input, shape index: {}]
  %s4 = inlined_call_operand.vmem [shape: f32[1,128], index: 4, kind: input, shape index: {}]
  %s5 = inlined_call_operand.hbm [shape: f32[16,128], index: 5, kind: output, shape index: {}]
  %s6 = sld [smem:[#allocation0]]
  $region42: #{tpu_custom_call.1} parent=0
    _
  %s8 = ssub.s32 1, %s6
  %s9 = scalar_select 0, %s8, %s6
  $region1: #{tpu_custom_call.1} parent=0
    #allocation2 [shape = 'u8[8192]{0}', space=vmem, size = 0x2000, scoped, tag = 'input window, operand 0, single buffered']
    #allocation3 [shape = 's32[1]{0}', space=sflag, size = 0x4, scoped, tag = 'scoped memory for tpu_custom_call.1']
    #allocation4 [shape = 's32[1]{0}', space=sflag, size = 0x4, scoped, tag = 'scoped memory for tpu_custom_call.1']
    #allocation5 [shape = 'u8[65536]{0}', space=vmem, size = 0x10000, scoped, tag = 'input window, operand 1, single buffered']
    #allocation6 [shape = 's32[1]{0}', space=sflag, size = 0x4, scoped, tag = 'scoped memory for tpu_custom_call.1']
    #allocation7 [shape = 'u8[32768]{0}', space=vmem, size = 0x8000, scoped, tag = 'input window, operand 3, single buffered']
    #allocation8 [shape = 'u8[8192]{0}', space=vmem, size = 0x2000, scoped, tag = 'output window, operand 0, single buffered']
    %10 = vsyncpa [#allocation3], 0
    %11 = vsyncpa [#allocation6], 0
    %12 = vsyncpa [#allocation4], 0
    // Predicated region
    $region2: #{tpu_custom_call.1} parent=1 // pred_check
      _
    $region3: #{tpu_custom_call.1} parent=1 // pred_check_branch
      %14 = sbr.rel (0) target = $region5
    $region4: #{tpu_custom_call.1} parent=1 // pred_region
      %s16 = ssub.s32 256, 256
      %17 = vsyncadd [#allocation3], %s16
      %s18 = sshll.u32 [#allocation2], 4
      %s19 = int_to_ptr.vmem [resolvable:$true] %s18
      %24 = dma.hbm_to_vmem [thread:$0]  %s0, 256, %s19, [#allocation3], 128, 128, 8
    $region5: #{tpu_custom_call.1} parent=1 // pred_fallthru
      _
    // Predicated region
    $region6: #{tpu_custom_call.1} parent=1 // pred_check
      _
    $region7: #{tpu_custom_call.1} parent=1 // pred_check_branch
      %26 = sbr.rel (0) target = $region9
    $region8: #{tpu_custom_call.1} parent=1 // pred_region
      %s28 = ssub.s32 2048, 2048
      %29 = vsyncadd [#allocation6], %s28
      %s30 = sshll.u32 [#allocation5], 4
      %s31 = int_to_ptr.vmem [resolvable:$true] %s30
      %36 = dma.hbm_to_vmem [thread:$0]  %s1, 2048, %s31, [#allocation6], 64, 64, 4
    $region9: #{tpu_custom_call.1} parent=1 // pred_fallthru
      _
    // Predicated region
    $region10: #{tpu_custom_call.1} parent=1 // pred_check
      _
    $region11: #{tpu_custom_call.1} parent=1 // pred_check_branch
      %38 = sbr.rel (0) target = $region13
    $region12: #{tpu_custom_call.1} parent=1 // pred_region
      _
    $region13: #{tpu_custom_call.1} parent=1 // pred_fallthru
      _
    // Predicated region
    $region14: #{tpu_custom_call.1} parent=1 // pred_check
      _
    $region15: #{tpu_custom_call.1} parent=1 // pred_check_branch
      %40 = sbr.rel (0) target = $region17
    $region16: #{tpu_custom_call.1} parent=1 // pred_region
      %s42 = ssub.s32 1024, 1024
      %43 = vsyncadd [#allocation6], %s42
      %s44 = sshll.u32 [#allocation7], 4
      %s45 = int_to_ptr.vmem [resolvable:$true] %s44
      %50 = dma.hbm_to_vmem [thread:$0]  %s3, 1024, %s45, [#allocation6], 64, 64, 4
    $region17: #{tpu_custom_call.1} parent=1 // pred_fallthru
      _
    // Predicated region
    $region18: #{tpu_custom_call.1} parent=1 // pred_check
      _
    $region19: #{tpu_custom_call.1} parent=1 // pred_check_branch
      %52 = sbr.rel (0) target = $region21
    $region20: #{tpu_custom_call.1} parent=1 // pred_region
      _
    $region21: #{tpu_custom_call.1} parent=1 // pred_fallthru
      _
    // Predicated region
    $region22: #{tpu_custom_call.1} parent=1 // pred_check
      _
    $region23: #{tpu_custom_call.1} parent=1 // pred_check_branch
      %54 = sbr.rel (0) target = $region25
    $region24: #{tpu_custom_call.1} parent=1 // pred_region
      %55 = dma.done [#allocation3], 256
    $region25: #{tpu_custom_call.1} parent=1 // pred_fallthru
      _
    // Predicated region
    $region26: #{tpu_custom_call.1} parent=1 // pred_check
      _
    $region27: #{tpu_custom_call.1} parent=1 // pred_check_branch
      %57 = sbr.rel (0) target = $region29
    $region28: #{tpu_custom_call.1} parent=1 // pred_region
      %58 = dma.done [#allocation6], 2048
    $region29: #{tpu_custom_call.1} parent=1 // pred_fallthru
      _
    // Predicated region
    $region30: #{tpu_custom_call.1} parent=1 // pred_check
      _
    $region31: #{tpu_custom_call.1} parent=1 // pred_check_branch
      %60 = sbr.rel (0) target = $region33
    $region32: #{tpu_custom_call.1} parent=1 // pred_region
      %61 = dma.done [#allocation6], 1024
    $region33: #{tpu_custom_call.1} parent=1 // pred_fallthru
      _
    %v63 = vld [vmem:[#allocation2] sm:$0xff]
    %v64 = vld [vmem:[#allocation2 + $0x8] sm:$0xff]
    %v65 = vld [vmem:[#allocation5] sm:$0xf]
    %v66 = vld [vmem:[#allocation5 + $0x4] sm:$0xf]
    %v67 = vld [vmem:[#allocation5 + $0x8] sm:$0xf]
    %v68 = vld [vmem:[#allocation5 + $0xc] sm:$0xf]
    %v69 = vld [vmem:[#allocation5 + $0x10] sm:$0xf]
    %v70 = vld [vmem:[#allocation5 + $0x14] sm:$0xf]
    %v71 = vld [vmem:[#allocation5 + $0x18] sm:$0xf]
    %v72 = vld [vmem:[#allocation5 + $0x1c] sm:$0xf]
    %v73 = vld [vmem:[#allocation5 + $0x20] sm:$0xf]
    %v74 = vld [vmem:[#allocation5 + $0x24] sm:$0xf]
    %v75 = vld [vmem:[#allocation5 + $0x28] sm:$0xf]
    %v76 = vld [vmem:[#allocation5 + $0x2c] sm:$0xf]
    %v77 = vld [vmem:[#allocation5 + $0x30] sm:$0xf]
    %v78 = vld [vmem:[#allocation5 + $0x34] sm:$0xf]
    %v79 = vld [vmem:[#allocation5 + $0x38] sm:$0xf]
    %v80 = vld [vmem:[#allocation5 + $0x3c] sm:$0xf]
    %v81 = vld [vmem:[#allocation5 + $0x40] sm:$0xf]
    %v82 = vld [vmem:[#allocation5 + $0x44] sm:$0xf]
    %v83 = vld [vmem:[#allocation5 + $0x48] sm:$0xf]
    %v84 = vld [vmem:[#allocation5 + $0x4c] sm:$0xf]
    %v85 = vld [vmem:[#allocation5 + $0x50] sm:$0xf]
    %v86 = vld [vmem:[#allocation5 + $0x54] sm:$0xf]
    %v87 = vld [vmem:[#allocation5 + $0x58] sm:$0xf]
    %v88 = vld [vmem:[#allocation5 + $0x5c] sm:$0xf]
    %v89 = vld [vmem:[#allocation5 + $0x60] sm:$0xf]
    %v90 = vld [vmem:[#allocation5 + $0x64] sm:$0xf]
    %v91 = vld [vmem:[#allocation5 + $0x68] sm:$0xf]
    %v92 = vld [vmem:[#allocation5 + $0x6c] sm:$0xf]
    %v93 = vld [vmem:[#allocation5 + $0x70] sm:$0xf]
    %v94 = vld [vmem:[#allocation5 + $0x74] sm:$0xf]
    %v95 = vld [vmem:[#allocation5 + $0x78] sm:$0xf]
    %v96 = vld [vmem:[#allocation5 + $0x7c] sm:$0xf]
    %v97 = vld [vmem:[%s2] sm:$0x1]
    %v99 = vlaneseq
    %v100 = vshrl.u32 %v99, 7
    %v101 = vsub.s32 0, %v100
    %v102 = vrot.slane %v97, %v101
    %v106 = vunpack.c.l.b16 %v63
    %v107 = vunpack.c.h.b16 %v63
    %v108 = vunpack.c.l.b16 %v64
    %v109 = vunpack.c.h.b16 %v64
    %v110 = vpack.c.b16 %v108, %v106
    %v111 = vpack.c.b16 %v109, %v107
    %v146 = vunpack.c.l.b16 %v65
    %v147 = vunpack.c.l.b16 %v66
    %v148 = vunpack.c.l.b16 %v67
    %v149 = vunpack.c.l.b16 %v68
    %v150 = vunpack.c.l.b16 %v69
    %v151 = vunpack.c.l.b16 %v70
    %v152 = vunpack.c.l.b16 %v71
    %v153 = vunpack.c.l.b16 %v72
    %v154 = vunpack.c.l.b16 %v73
    %v155 = vunpack.c.l.b16 %v74
    %v156 = vunpack.c.l.b16 %v75
    %v157 = vunpack.c.l.b16 %v76
    %v158 = vunpack.c.l.b16 %v77
    %v159 = vunpack.c.l.b16 %v78
    %v160 = vunpack.c.l.b16 %v79
    %v161 = vunpack.c.l.b16 %v80
    %v162 = vunpack.c.l.b16 %v81
    %v163 = vunpack.c.l.b16 %v82
    %v164 = vunpack.c.l.b16 %v83
    %v165 = vunpack.c.l.b16 %v84
    %v166 = vunpack.c.l.b16 %v85
    %v167 = vunpack.c.l.b16 %v86
    %v168 = vunpack.c.l.b16 %v87
    %v169 = vunpack.c.l.b16 %v88
    %v170 = vunpack.c.l.b16 %v89
    %v171 = vunpack.c.l.b16 %v90
    %v172 = vunpack.c.l.b16 %v91
    %v173 = vunpack.c.l.b16 %v92
    %v174 = vunpack.c.l.b16 %v93
    %v175 = vunpack.c.l.b16 %v94
    %v176 = vunpack.c.l.b16 %v95
    %v177 = vunpack.c.l.b16 %v96
    %v178 = vpack.c.b16 %v147, %v146
    %v179 = vpack.c.b16 %v149, %v148
    %v180 = vpack.c.b16 %v151, %v150
    %v181 = vpack.c.b16 %v153, %v152
    %v182 = vpack.c.b16 %v155, %v154
    %v183 = vpack.c.b16 %v157, %v156
    %v184 = vpack.c.b16 %v159, %v158
    %v185 = vpack.c.b16 %v161, %v160
    %v186 = vpack.c.b16 %v163, %v162
    %v187 = vpack.c.b16 %v165, %v164
    %v188 = vpack.c.b16 %v167, %v166
    %v189 = vpack.c.b16 %v169, %v168
    %v190 = vpack.c.b16 %v171, %v170
    %v191 = vpack.c.b16 %v173, %v172
    %v192 = vpack.c.b16 %v175, %v174
    %v193 = vpack.c.b16 %v177, %v176
    %210 = vmatprep.subr.bf16.mxu0 0
    %211 = vmatpush1.bf16.msra.mxu0 %v178
    %212 = vmatprep.subr.bf16.mxu0 0
    %213 = vmatpush1.bf16.msra.mxu0 %v179
    %214 = vmatprep.subr.bf16.mxu0 0
    %215 = vmatpush1.bf16.msra.mxu0 %v180
    %216 = vmatprep.subr.bf16.mxu0 0
    %217 = vmatpush1.bf16.msra.mxu0 %v181
    %218 = vmatprep.subr.bf16.mxu0 0
    %219 = vmatpush1.bf16.msra.mxu0 %v182
    %220 = vmatprep.subr.bf16.mxu0 0
    %221 = vmatpush1.bf16.msra.mxu0 %v183
    %222 = vmatprep.subr.bf16.mxu0 0
    %223 = vmatpush1.bf16.msra.mxu0 %v184
    %224 = vmatprep.subr.bf16.mxu0 0
    %225 = vmatpush1.bf16.msra.mxu0 %v185
    %226 = vmatprep.subr.bf16.mxu0 0
    %227 = vmatpush1.bf16.msra.mxu0 %v186
    %228 = vmatprep.subr.bf16.mxu0 0
    %229 = vmatpush1.bf16.msra.mxu0 %v187
    %230 = vmatprep.subr.bf16.mxu0 0
    %231 = vmatpush1.bf16.msra.mxu0 %v188
    %232 = vmatprep.subr.bf16.mxu0 0
    %233 = vmatpush1.bf16.msra.mxu0 %v189
    %234 = vmatprep.subr.bf16.mxu0 0
    %235 = vmatpush1.bf16.msra.mxu0 %v190
    %236 = vmatprep.subr.bf16.mxu0 0
    %237 = vmatpush1.bf16.msra.mxu0 %v191
    %238 = vmatprep.subr.bf16.mxu0 0
    %239 = vmatpush1.bf16.msra.mxu0 %v192
    %240 = vmatprep.subr.bf16.mxu0 0
    %241 = vmatpush1.bf16.msra.mxu0 %v193
    %242 = vmatprep.mubr.bf16.mxu0 %v111
    %243 = vmatmul.mubr.bf16.gmra.mrb[0].mxu0 %v110
    %v244 = vpop.f32.mrb[0].mxu0
    %v245 = vadd.f32 %v102, %v244
    %v246 = vpop.f32.mrb[0].mxu0
    %v247 = vpop.f32.mrb[0].mxu0
    %v248 = vadd.f32 %v102, %v247
    %v249 = vpop.f32.mrb[0].mxu0
    %250 = vdwg.mxu0
    %v251 = vmax.f32 %v245, 0.0
    %v252 = vmax.f32 %v248, 0.0
    %v253 = vpack.c.bf16 %v252, %v251
    %v254 = vld [vmem:[#allocation7] sm:$0xf]
    %v255 = vld [vmem:[#allocation7 + $0x4] sm:$0xf]
    %v256 = vld [vmem:[#allocation7 + $0x8] sm:$0xf]
    %v257 = vld [vmem:[#allocation7 + $0xc] sm:$0xf]
    %v258 = vld [vmem:[#allocation7 + $0x10] sm:$0xf]
    %v259 = vld [vmem:[#allocation7 + $0x14] sm:$0xf]
    %v260 = vld [vmem:[#allocation7 + $0x18] sm:$0xf]
    %v261 = vld [vmem:[#allocation7 + $0x1c] sm:$0xf]
    %v262 = vld [vmem:[#allocation7 + $0x20] sm:$0xf]
    %v263 = vld [vmem:[#allocation7 + $0x24] sm:$0xf]
    %v264 = vld [vmem:[#allocation7 + $0x28] sm:$0xf]
    %v265 = vld [vmem:[#allocation7 + $0x2c] sm:$0xf]
    %v266 = vld [vmem:[#allocation7 + $0x30] sm:$0xf]
    %v267 = vld [vmem:[#allocation7 + $0x34] sm:$0xf]
    %v268 = vld [vmem:[#allocation7 + $0x38] sm:$0xf]
    %v269 = vld [vmem:[#allocation7 + $0x3c] sm:$0xf]
    %v270 = vld [vmem:[%s4] sm:$0x1]
    %v272 = vlaneseq
    %v273 = vshrl.u32 %v272, 7
    %v274 = vsub.s32 0, %v273
    %v275 = vrot.slane %v270, %v274
    %v293 = vunpack.c.l.b16 %v254
    %v294 = vunpack.c.l.b16 %v255
    %v295 = vunpack.c.l.b16 %v256
    %v296 = vunpack.c.l.b16 %v257
    %v297 = vunpack.c.l.b16 %v258
    %v298 = vunpack.c.l.b16 %v259
    %v299 = vunpack.c.l.b16 %v260
    %v300 = vunpack.c.l.b16 %v261
    %v301 = vunpack.c.l.b16 %v262
    %v302 = vunpack.c.l.b16 %v263
    %v303 = vunpack.c.l.b16 %v264
    %v304 = vunpack.c.l.b16 %v265
    %v305 = vunpack.c.l.b16 %v266
    %v306 = vunpack.c.l.b16 %v267
    %v307 = vunpack.c.l.b16 %v268
    %v308 = vunpack.c.l.b16 %v269
    %v309 = vpack.c.b16 %v294, %v293
    %v310 = vpack.c.b16 %v296, %v295
    %v311 = vpack.c.b16 %v298, %v297
    %v312 = vpack.c.b16 %v300, %v299
    %v313 = vpack.c.b16 %v302, %v301
    %v314 = vpack.c.b16 %v304, %v303
    %v315 = vpack.c.b16 %v306, %v305
    %v316 = vpack.c.b16 %v308, %v307
    %325 = vmatprep.subr.bf16.mxu0 0
    %326 = vmatpush1.bf16.msra.mxu0 %v309
    %327 = vmatprep.subr.bf16.mxu0 0
    %328 = vmatpush1.bf16.msra.mxu0 %v310
    %329 = vmatprep.subr.bf16.mxu0 0
    %330 = vmatpush1.bf16.msra.mxu0 %v311
    %331 = vmatprep.subr.bf16.mxu0 0
    %332 = vmatpush1.bf16.msra.mxu0 %v312
    %333 = vmatprep.subr.bf16.mxu0 0
    %334 = vmatpush1.bf16.msra.mxu0 %v313
    %335 = vmatprep.subr.bf16.mxu0 0
    %336 = vmatpush1.bf16.msra.mxu0 %v314
    %337 = vmatprep.subr.bf16.mxu0 0
    %338 = vmatpush1.bf16.msra.mxu0 %v315
    %339 = vmatprep.subr.bf16.mxu0 0
    %340 = vmatpush1.bf16.msra.mxu0 %v316
    %341 = vmatprep.subr.bf16.mxu0 0
    %342 = vmatpush1.bf16.msra.mxu0 0
    %343 = vmatprep.subr.bf16.mxu0 0
    %344 = vmatpush1.bf16.msra.mxu0 0
    %345 = vmatprep.subr.bf16.mxu0 0
    %346 = vmatpush1.bf16.msra.mxu0 0
    %347 = vmatprep.subr.bf16.mxu0 0
    %348 = vmatpush1.bf16.msra.mxu0 0
    %349 = vmatprep.subr.bf16.mxu0 0
    %350 = vmatpush1.bf16.msra.mxu0 0
    %351 = vmatprep.subr.bf16.mxu0 0
    %352 = vmatpush1.bf16.msra.mxu0 0
    %353 = vmatprep.subr.bf16.mxu0 0
    %354 = vmatpush1.bf16.msra.mxu0 0
    %355 = vmatprep.subr.bf16.mxu0 0
    %356 = vmatpush1.bf16.msra.mxu0 0
    %357 = vmatprep.mubr.bf16.mxu0 0
    %358 = vmatmul.mubr.bf16.gmra.mrb[0].mxu0 %v253
    %v359 = vpop.f32.mrb[0].mxu0
    %v360 = vadd.f32 %v275, %v359
    %v361 = vpop.f32.mrb[0].mxu0
    %v362 = vpop.f32.mrb[0].mxu0
    %v363 = vadd.f32 %v275, %v362
    %v364 = vpop.f32.mrb[0].mxu0
    %365 = vdwg.mxu0
    %366 = vst [vmem:[#allocation8] sm:$0xff] %v360
    %367 = vst [vmem:[#allocation8 + $0x8] sm:$0xff] %v363
    // Predicated region
    $region34: #{tpu_custom_call.1} parent=1 // pred_check
      _
    $region35: #{tpu_custom_call.1} parent=1 // pred_check_branch
      %369 = sbr.rel (0) target = $region37
    $region36: #{tpu_custom_call.1} parent=1 // pred_region
      %s371 = ssub.s32 256, 256
      %372 = vsyncadd [#allocation4], %s371
      %s373 = sshll.u32 [#allocation8], 4
      %s374 = int_to_ptr.vmem [resolvable:$true] %s373
      %379 = dma.vmem_to_hbm [thread:$0]  %s374, 256, %s5, [#allocation4], 128, 128, 8
    $region37: #{tpu_custom_call.1} parent=1 // pred_fallthru
      _
    // Predicated region
    $region38: #{tpu_custom_call.1} parent=1 // pred_check
      _
    $region39: #{tpu_custom_call.1} parent=1 // pred_check_branch
      %381 = sbr.rel (0) target = $region41
    $region40: #{tpu_custom_call.1} parent=1 // pred_region
      %382 = dma.done [#allocation4], 256
    $region41: #{tpu_custom_call.1} parent=1 // pred_fallthru
      _
    %383 = vsyncpa [#allocation3], 1
    %384 = vsyncpa [#allocation6], 1
    %385 = vsyncpa [#allocation4], 1

</llo_original>
